<compile_context>
chip_gen: v6e
topology: v6e:2x2x1
jax: 0.10.0
libtpu: 0.0.40
codegen_flags: <defaults>
</compile_context>

<pallas_src>
import functools

import jax
import jax.numpy as jnp
from jax.experimental import pallas as pl
from jax.experimental.pallas import tpu as pltpu


# ---------------------------------------------------------------------------
# Static shape helpers (plain Python, trace time only).
# ---------------------------------------------------------------------------

def _level_windows(w: int, num_levels: int):
    """Static (kernel_size, out_w) per pyramid level, matching F.max_pool2d math."""
    out = []
    for i in range(num_levels):
        ks = w // (i + 1)
        out_w = (w - ks) // ks + 1  # == floor(w / ks)
        out.append((ks, out_w))
    return out


def _round_up(x: int, m: int) -> int:
    return -(-x // m) * m


def _sublane_tile(itemsize: int) -> int:
    # 8 sublanes per vreg for 32-bit dtypes, 16 for 16-bit, 32 for 8-bit.
    return 8 * max(1, 4 // itemsize)


def _padded_block_bytes(tile_b, h, w, tile_c, itemsize):
    """VMEM footprint of a (tile_b, h, w, tile_c) block after (sublane, lane)
    padding: w sits on sublanes, tile_c on lanes."""
    return (tile_b * h * _round_up(w, _sublane_tile(itemsize))
            * _round_up(tile_c, 128) * itemsize)


def _divisors(n: int):
    return [d for d in range(1, n + 1) if n % d == 0]


def _largest_proper_divisor(n: int) -> int:
    for d in range(2, int(n ** 0.5) + 1):
        if n % d == 0:
            return n // d
    return 1


def _plan_tiling(bs, c, h, w, itemsize, target_bytes):
    """Pick (c_pad, tile_c, tile_b).

    * tile_c is lane-aligned (multiple of 128) whenever c allows it; large
      non-aligned channel counts get padded to a lane multiple so a single
      block never blows the VMEM budget.
    * tile_b grows until the padded block reaches ~target_bytes (amortizes
      per-grid-step overhead on small feature maps).
    * If everything collapsed to a single grid step, split the batch (or the
      channel tile) so both v7x TensorCores get work.
    """
    if c % 128 == 0:
        c_pad, tile_c = c, 128
        for t in range(128, c + 1, 128):
            if c % t == 0 and _padded_block_bytes(1, h, w, t, itemsize) <= target_bytes:
                tile_c = t
    elif _padded_block_bytes(1, h, w, c, itemsize) <= target_bytes:
        c_pad, tile_c = c, c          # full (non-aligned) channel axis fits
    else:
        # Large non-128-aligned c: pad channels so we can tile lane-aligned.
        c_pad, tile_c = _round_up(c, 128), 128
        for t in range(128, c_pad + 1, 128):
            if c_pad % t == 0 and _padded_block_bytes(1, h, w, t, itemsize) <= target_bytes:
                tile_c = t
    # TODO(synk): for very large h*w (a single 128-channel block > target),
    # split the h axis with an accumulating "arbitrary" grid dimension.

    tile_b = 1
    for t in _divisors(bs):
        if _padded_block_bytes(t, h, w, tile_c, itemsize) <= target_bytes:
            tile_b = t

    # v7x megacore: avoid a 1-step grid when the problem can be split.
    if (bs // tile_b) * (c_pad // tile_c) == 1:
        if bs > 1:
            tile_b = _largest_proper_divisor(bs)
        elif tile_c % 256 == 0:
            tile_c //= 2
    return c_pad, tile_c, tile_b


# ---------------------------------------------------------------------------
# Kernel.
# ---------------------------------------------------------------------------

def _spp_kernel(x_ref, o_ref, *, levels, pool_type, h):
    # x_ref: (tile_b, h, w, tile_c)  -- channels on lanes, w on sublanes.
    # o_ref: (tile_b, n_windows, tile_c) -- lane-dense output slab.
    x = x_ref[...]

    if pool_type == "max_pool":
        row = jnp.max(x, axis=1)                         # (tb, w, tc), per-lane VPU max
    else:
        row = jnp.sum(x.astype(jnp.float32), axis=1)     # f32 h-sum, done once

    pieces = []
    for ks, out_w in levels:
        # Static sublane slices per window (no non-8-aligned reshape); the tail
        # column is dropped by design, matching floor pooling in F.*_pool2d.
        for j in range(out_w):
            win = row[:, j * ks:(j + 1) * ks, :]
            if pool_type == "max_pool":
                piece = jnp.max(win, axis=1, keepdims=True)
            else:
                piece = jnp.sum(win, axis=1, keepdims=True) * (1.0 / float(h * ks))
            pieces.append(piece)
    out = pieces[0] if len(pieces) == 1 else jnp.concatenate(pieces, axis=1)
    o_ref[...] = out.astype(o_ref.dtype)                 # single lane-dense store


# ---------------------------------------------------------------------------
# Wrapper.
# ---------------------------------------------------------------------------

def spp_layer(x, num_levels: int = 3, pool_type: str = "max_pool"):
    """Pallas TPU implementation of SPPLayer.forward; x is NCHW like PyTorch.

    Call under jax.jit so the NCHW->NHWC transpose (and the rare pads) can
    fuse into the pallas_call input DMA instead of costing extra HBM passes.
    """
    bs, c, h, w = x.shape

    # Replication pad on the right if width < 9 (nn.ReplicationPad2d((0, 9-w, 0, 0))).
    # TODO(synk): fold this edge-pad into the kernel's window math instead of a
    # wrapper jnp.pad pass (only matters for the rare w < 9 inputs).
    if w < 9:
        x = jnp.pad(x, ((0, 0), (0, 0), (0, 0), (0, 9 - w)), mode="edge")
        bs, c, h, w = x.shape

    levels = _level_windows(w, num_levels)
    n_windows = sum(ow for _, ow in levels)
    itemsize = x.dtype.itemsize

    # Per-block budget: ~8 MiB, derated on small-VMEM parts (v7x: 64 MiB/TC).
    # Double-buffered this stays inside the scoped limit requested below.
    try:
        vmem_cap = int(pltpu.get_tpu_info().vmem_capacity_bytes)
    except Exception:  # interpret mode / unknown chip
        vmem_cap = 64 << 20
    target_bytes = max(2 << 20, min(8 << 20, vmem_cap // 8))

    c_pad, tile_c, tile_b = _plan_tiling(bs, c, h, w, itemsize, target_bytes)
    if c_pad != c:
        # Pooling is per-channel: padded channels produce junk rows that are
        # sliced away below and never mix with real outputs.
        x = jnp.pad(x, ((0, 0), (0, c_pad - c), (0, 0), (0, 0)))

    # Channels on the lane axis.  The transpose is only an expression here;
    # allow_input_fusion lets XLA fold it into the kernel's input DMA (verify
    # in xprof that no standalone transpose/copy op remains).
    x_t = jnp.transpose(x, (0, 2, 3, 1))                 # (bs, h, w, c_pad)

    in_blk = _padded_block_bytes(tile_b, h, w, tile_c, itemsize)
    out_blk = (tile_b * _round_up(n_windows, _sublane_tile(itemsize))
               * _round_up(tile_c, 128) * itemsize)
    # 2x double-buffered input + 2x output + in-kernel temporaries + slack,
    # floored at 16 MiB and capped at 48 MiB (v7x has 64 MiB VMEM per TC).
    vmem_limit = min(48 << 20, max(16 << 20, 4 * in_blk + 2 * out_blk + (4 << 20)))

    kernel = functools.partial(_spp_kernel, levels=levels, pool_type=pool_type, h=h)

    # NOTE: kernel is ~1 op/byte and HBM-bound — keep the reductions on
    # VPU/XLU (no pooling-matrix matmul); only consider pl.Buffered(3) on the
    # input spec if a profile still shows exposed input DMA.
    pooled = pl.pallas_call(
        kernel,
        out_shape=jax.ShapeDtypeStruct((bs, n_windows, c_pad), x.dtype),
        grid=(bs // tile_b, c_pad // tile_c),
        in_specs=[
            pl.BlockSpec((tile_b, h, w, tile_c), lambda b, cc: (b, 0, 0, cc)),
        ],
        out_specs=pl.BlockSpec((tile_b, n_windows, tile_c), lambda b, cc: (b, 0, cc)),
        compiler_params=pltpu.CompilerParams(
            dimension_semantics=("parallel", "parallel"),
            vmem_limit_bytes=vmem_limit,
            allow_input_fusion=[True],
        ),
    )(x_t)

    # Glue: reorder to the PyTorch flatten order.  Per level,
    # (bs, c, 1, out_w).view(bs, -1) is channel-major / window-minor; levels
    # are then concatenated.  Pooled tensor is tiny, so this is cheap.
    out_chunks = []
    start = 0
    for _, out_w in levels:
        lvl = pooled[:, start:start + out_w, :c]          # (bs, out_w, c)
        out_chunks.append(jnp.transpose(lvl, (0, 2, 1)).reshape(bs, c * out_w))
        start += out_w
    return jnp.concatenate(out_chunks, axis=-1)


# ---------------------------------------------------------------------------
# Plain-JAX reference mirroring the PyTorch module, for verification.
# ---------------------------------------------------------------------------

def _spp_reference(x, num_levels: int = 3, pool_type: str = "max_pool"):
    bs, c, h, w = x.shape
    if w < 9:
        x = jnp.pad(x, ((0, 0), (0, 0), (0, 0), (0, 9 - w)), mode="edge")
        bs, c, h, w = x.shape
    chunks = []
    for ks, out_w in _level_windows(w, num_levels):
        cols = []
        for j in range(out_w):
            win = x[:, :, :, j * ks:j * ks + ks]          # (bs, c, h, ks)
            if pool_type == "max_pool":
                cols.append(jnp.max(win, axis=(2, 3)))
            else:
                cols.append(jnp.mean(win, axis=(2, 3)))
        lvl = jnp.stack(cols, axis=-1)                    # (bs, c, out_w)
        chunks.append(lvl.reshape(bs, c * out_w))
    return jnp.concatenate(chunks, axis=-1)


if __name__ == "__main__":
    key = jax.random.PRNGKey(0)
    x = jax.random.normal(key, (2, 4, 16, 16), dtype=jnp.float32)  # NCHW

    for pool in ("max_pool", "avg_pool"):
        fn = jax.jit(functools.partial(spp_layer, num_levels=3, pool_type=pool))
        out = jax.block_until_ready(fn(x))
        ref = _spp_reference(x, num_levels=3, pool_type=pool)
        assert out.shape == ref.shape, (pool, out.shape, ref.shape)
        assert jnp.allclose(out, ref, atol=1e-5, rtol=1e-5), f"mismatch ({pool})"

    # Exercise the replication-pad path (w < 9).
    x_small = jax.random.normal(jax.random.PRNGKey(1), (2, 4, 16, 6), dtype=jnp.float32)
    fn = jax.jit(functools.partial(spp_layer, num_levels=3, pool_type="max_pool"))
    out = jax.block_until_ready(fn(x_small))
    ref = _spp_reference(x_small, num_levels=3, pool_type="max_pool")
    assert out.shape == ref.shape, (out.shape, ref.shape)
    assert jnp.allclose(out, ref, atol=1e-5, rtol=1e-5), "mismatch (pad path)"

    print("KERNEL_OK")
</pallas_src>

<mosaic_0001>
module attributes {stable_mosaic.version = 11 : i64} {
  func.func @_spp_kernel(%arg0: i32, %arg1: i32, %arg2: memref<1x16x16x4xf32, #tpu.memory_space<vmem>>, %arg3: memref<1x6x4xf32, #tpu.memory_space<vmem>>) attributes {dimension_semantics = [#tpu.dimension_semantics<parallel>, #tpu.dimension_semantics<parallel>], iteration_bounds = array<i64: 2, 1>, scalar_prefetch = 0 : i64, scratch_operands = 0 : i64, tpu.core_type = #tpu.core_type<tc>, window_params = [{transform_indices = @transform_0, window_bounds = array<i64: 1, 16, 16, 4>}, {transform_indices = @transform_1, window_bounds = array<i64: 1, 6, 4>}]} {
    %c0 = arith.constant 0 : index
    %c0_0 = arith.constant 0 : index
    %c0_1 = arith.constant 0 : index
    %c0_2 = arith.constant 0 : index
    %0 = vector.load %arg2[%c0, %c0_0, %c0_1, %c0_2] : memref<1x16x16x4xf32, #tpu.memory_space<vmem>>, vector<1x16x16x4xf32>
    %cst = arith.constant dense<0xFF800000> : vector<1x16x4xf32>
    %1 = vector.multi_reduction <maximumf>, %0, %cst [1] : vector<1x16x16x4xf32> to vector<1x16x4xf32>
    %cst_3 = arith.constant dense<0xFF800000> : vector<1x4xf32>
    %2 = vector.multi_reduction <maximumf>, %1, %cst_3 [1] : vector<1x16x4xf32> to vector<1x4xf32>
    %3 = vector.shape_cast %2 : vector<1x4xf32> to vector<1x1x4xf32>
    %4 = vector.extract_strided_slice %1 {offsets = [0, 0, 0], sizes = [1, 8, 4], strides = [1, 1, 1]} : vector<1x16x4xf32> to vector<1x8x4xf32>
    %cst_4 = arith.constant dense<0xFF800000> : vector<1x4xf32>
    %5 = vector.multi_reduction <maximumf>, %4, %cst_4 [1] : vector<1x8x4xf32> to vector<1x4xf32>
    %6 = vector.shape_cast %5 : vector<1x4xf32> to vector<1x1x4xf32>
    %7 = vector.extract_strided_slice %1 {offsets = [0, 8, 0], sizes = [1, 8, 4], strides = [1, 1, 1]} : vector<1x16x4xf32> to vector<1x8x4xf32>
    %cst_5 = arith.constant dense<0xFF800000> : vector<1x4xf32>
    %8 = vector.multi_reduction <maximumf>, %7, %cst_5 [1] : vector<1x8x4xf32> to vector<1x4xf32>
    %9 = vector.shape_cast %8 : vector<1x4xf32> to vector<1x1x4xf32>
    %10 = vector.extract_strided_slice %1 {offsets = [0, 0, 0], sizes = [1, 5, 4], strides = [1, 1, 1]} : vector<1x16x4xf32> to vector<1x5x4xf32>
    %cst_6 = arith.constant dense<0xFF800000> : vector<1x4xf32>
    %11 = vector.multi_reduction <maximumf>, %10, %cst_6 [1] : vector<1x5x4xf32> to vector<1x4xf32>
    %12 = vector.shape_cast %11 : vector<1x4xf32> to vector<1x1x4xf32>
    %13 = vector.extract_strided_slice %1 {offsets = [0, 5, 0], sizes = [1, 5, 4], strides = [1, 1, 1]} : vector<1x16x4xf32> to vector<1x5x4xf32>
    %cst_7 = arith.constant dense<0xFF800000> : vector<1x4xf32>
    %14 = vector.multi_reduction <maximumf>, %13, %cst_7 [1] : vector<1x5x4xf32> to vector<1x4xf32>
    %15 = vector.shape_cast %14 : vector<1x4xf32> to vector<1x1x4xf32>
    %16 = vector.extract_strided_slice %1 {offsets = [0, 10, 0], sizes = [1, 5, 4], strides = [1, 1, 1]} : vector<1x16x4xf32> to vector<1x5x4xf32>
    %cst_8 = arith.constant dense<0xFF800000> : vector<1x4xf32>
    %17 = vector.multi_reduction <maximumf>, %16, %cst_8 [1] : vector<1x5x4xf32> to vector<1x4xf32>
    %18 = vector.shape_cast %17 : vector<1x4xf32> to vector<1x1x4xf32>
    %19 = tpu.concatenate %3, %6, %9, %12, %15, %18 in 1 : vector<1x1x4xf32>, vector<1x1x4xf32>, vector<1x1x4xf32>, vector<1x1x4xf32>, vector<1x1x4xf32>, vector<1x1x4xf32> -> vector<1x6x4xf32>
    %c0_9 = arith.constant 0 : index
    %c0_10 = arith.constant 0 : index
    %c0_11 = arith.constant 0 : index
    %20 = vector.load %arg3[%c0_9, %c0_10, %c0_11] : memref<1x6x4xf32, #tpu.memory_space<vmem>>, vector<1x6x4xf32>
    tpu.vector_store %arg3[%c0_9, %c0_10, %c0_11], %19 {strides = array<i32>} : memref<1x6x4xf32, #tpu.memory_space<vmem>>, vector<1x6x4xf32>,
    return
  }
  func.func @transform_0(%arg0: i32, %arg1: i32) -> (i32, i32, i32, i32) {
    %c0_i32 = arith.constant 0 : i32
    %c0_i32_0 = arith.constant 0 : i32
    %c0_i32_1 = arith.constant 0 : i32
    return %arg0, %c0_i32, %c0_i32_0, %arg1 : i32, i32, i32, i32
  }
  func.func @transform_1(%arg0: i32, %arg1: i32) -> (i32, i32, i32) {
    %c0_i32 = arith.constant 0 : i32
    %c0_i32_0 = arith.constant 0 : i32
    return %arg0, %c0_i32, %arg1 : i32, i32, i32
  }
}

</mosaic_0001>

<llo_original>
// kernel: spp_layer.2
$region0: #{spp_layer.2}
  #allocation0 [shape = 'u32[]', space=smem, size = 0x4, offset = 0x4, fixed_abs, tag = 'smem constant byte address 0x4 - core index']
  #allocation1 [shape = 'u32[144,128]{1,0:T(1,128)}', space=vmem, size = 0x12000, scoped, tag = 'internal scratch']
  %s0 = inlined_call_operand.vmem [shape: f32[2,4,16,16], index: 0, kind: input, shape index: {}]
  %s1 = inlined_call_operand.vmem [shape: f32[2,6,4], index: 1, kind: output, shape index: {}]
  %s2 = sld [smem:[#allocation0]]
  $region37: #{spp_layer.2} parent=0
    _
  %s4 = ssub.s32 1, %s2
  %s5 = scalar_select 0, %s4, %s2
  loop: start=0, step=1, limit=4
  $region2: #{spp_layer.2} parent=0 // loop_pre_header
    _
  $region3: #{spp_layer.2} parent=0 // loop_header
    %s7 = sphi 0, %s11
    %p8 = scmp.ge.s32.totalorder %s7, 4
    %s14 = sphi 0, %s26
    %s15 = sphi 0, %s22
    %s16 = sphi 0, %s14
    %s17 = sphi 0, %s15
    %s18 = sphi 0, %s16
    %s19 = sphi 0, %s17
    %s31 = sphi 0, %s33
    %s34 = sphi 0, %s31
    %s35 = sphi 0, %s34
    %s51 = sphi 0, %s35
    %s59 = sphi 0, %s61
    %s62 = sphi 0, %s59
    %s63 = sphi 0, %s62
    %s79 = sphi 0, %s63
  $region4: #{spp_layer.2} parent=0 // loop_header_branch
    %10 = sbr.rel (%p8) target = $region8
  $region5: #{spp_layer.2} parent=0 // loop_body
    %s12 = ssub.s32 %s7, 1
    %s13 = ssub.s32 %s7, 2
    %s20 = sadd.s32 1, %s15
    %p21 = scmp.ge.s32.totalorder %s20, 1
    %s22 = scalar_select %p21, 0, %s20
    %s23 = sadd.s32 1, %s14
    %s24 = scalar_select %p21, %s23, %s14
    %p25 = scmp.ge.s32.totalorder %s24, 2
    %s26 = scalar_select %p25, 0, %s24
    %s27 = ssub.s32 %s14, %s26
    %s28 = ssub.s32 %s15, %s22
    %s29 = sor.u32 %s27, %s28
    %p30 = scmp.eq.s32.totalorder %s29, 0
    %s32 = sadd.s32 %s31, 1
    %s33 = scalar_select %p30, %s31, %s32
    %p36 = pneg %p30
    %p37 = scmp.eq.s32.totalorder %s7, 1
    %p38 = por %p36, %p37
    %p39 = scmp.ne.s32.totalorder %s31, %s34
    %p40 = scmp.eq.s32.totalorder %s7, 0
    %p41 = por %p39, %p40
    %p42 = scmp.ne.s32.totalorder %s31, %s34
    %p43 = scmp.eq.s32.totalorder %s12, 1
    %p44 = por %p42, %p43
    %p45 = scmp.ne.s32.totalorder %s34, %s35
    %p46 = scmp.eq.s32.totalorder %s12, 0
    %p47 = por %p45, %p46
    %p48 = scmp.ne.s32.totalorder %s34, %s35
    %p49 = scmp.eq.s32.totalorder %s13, 1
    %p50 = por %p48, %p49
    %p52 = scmp.ne.s32.totalorder %s35, %s51
    %p53 = scmp.eq.s32.totalorder %s13, 0
    %p54 = por %p52, %p53
    %s55 = ssub.s32 %s14, %s26
    %s56 = ssub.s32 %s15, %s22
    %s57 = sor.u32 %s55, %s56
    %p58 = scmp.eq.s32.totalorder %s57, 0
    %s60 = sadd.s32 %s59, 1
    %s61 = scalar_select %p58, %s59, %s60
    %p64 = pneg %p58
    %p65 = scmp.eq.s32.totalorder %s7, 1
    %p66 = por %p64, %p65
    %p67 = scmp.ne.s32.totalorder %s59, %s62
    %p68 = scmp.eq.s32.totalorder %s7, 0
    %p69 = por %p67, %p68
    %p70 = scmp.ne.s32.totalorder %s59, %s62
    %p71 = scmp.eq.s32.totalorder %s12, 1
    %p72 = por %p70, %p71
    %p73 = scmp.ne.s32.totalorder %s62, %s63
    %p74 = scmp.eq.s32.totalorder %s12, 0
    %p75 = por %p73, %p74
    %p76 = scmp.ne.s32.totalorder %s62, %s63
    %p77 = scmp.eq.s32.totalorder %s13, 1
    %p78 = por %p76, %p77
    %p80 = scmp.ne.s32.totalorder %s63, %s79
    %p81 = scmp.eq.s32.totalorder %s13, 0
    %p82 = por %p80, %p81
    %p83 = scmp.le.s32.totalorder 1, %s7
    %p84 = scmp.lt.s32.totalorder %s7, 3
    %p85 = pnand %p83, %p84
    %p86 = pneg %p85
    // Predicated region
    $region9: #{spp_layer.2} parent=5 // pred_check
      _
    $region10: #{spp_layer.2} parent=5 // pred_check_branch
      %88 = sbr.rel (%p85) target = $region12
    $region11: #{spp_layer.2} parent=5 // pred_region
      %s89 = ssub.s32 %s7, 1
    $region12: #{spp_layer.2} parent=5 // pred_fallthru
      _
    %p90 = scmp.lt.s32.totalorder %s7, 2
    // Predicated region
    $region13: #{spp_layer.2} parent=5 // pred_check
      %p91 = pneg %p90
    $region14: #{spp_layer.2} parent=5 // pred_check_branch
      %93 = sbr.rel (%p91) target = $region16
    $region15: #{spp_layer.2} parent=5 // pred_region
      // Predicated region
      $region17: #{spp_layer.2} parent=15 // pred_check
        %p94 = pneg %p41
      $region18: #{spp_layer.2} parent=15 // pred_check_branch
        %96 = sbr.rel (%p94) target = $region20
      $region19: #{spp_layer.2} parent=15 // pred_region
        %p97 = scmp.lt.s32.totalorder %s14, 1
        %s98 = scalar_select %p97, %s14, 1
        %p99 = scmp.lt.s32.totalorder %s15, 0
        %s100 = scalar_select %p99, %s15, 0
        %s101 = smul.addr %s98, 32
        %s102 = sadd.s32 %s100, %s101
        %s103 = smul.addr %s102, 8
        %s104 = scalar_lea.vmem %s0, %s103
      $region20: #{spp_layer.2} parent=15 // pred_fallthru
        _
    $region16: #{spp_layer.2} parent=5 // pred_fallthru
      _
    %p105 = scmp.le.s32.totalorder 1, %s7
    %p106 = scmp.lt.s32.totalorder %s7, 3
    %p107 = pnand %p105, %p106
    %p108 = pneg %p107
    // Predicated region
    $region21: #{spp_layer.2} parent=5 // pred_check
      _
    $region22: #{spp_layer.2} parent=5 // pred_check_branch
      %110 = sbr.rel (%p107) target = $region24
    $region23: #{spp_layer.2} parent=5 // pred_region
      #allocation2 [shape = 'u8[131072]{0}', space=vmem, size = 0x20000, dematerialized = true, scoped, tag = 'FusionAdapter Buffer %fusion.1 = f32[2,16,16,4]{3,2,1,0:T(8,128)} fusion(%param_0.1), kind=kLoop, calls=%fused_computation.1.clone, metadata={op_name="jit(spp_layer)/transpose" stack_frame_id=7}']
      %s111 = ssub.s32 %s7, 1
      %p112 = scmp.lt.s32.totalorder %s16, 1
      %s113 = scalar_select %p112, %s16, 1
      %p114 = scmp.lt.s32.totalorder %s17, 0
      %s115 = scalar_select %p114, %s17, 0
      %s116 = smul.addr %s113, 32
      %s117 = sadd.s32 %s115, %s116
      %s118 = smul.addr %s117, 8
      %s119 = scalar_lea.vmem %s0, %s118
      %p120 = pneg %p47
      %p121 = pneg %p44
      %p122 = pneg %p75
      %p123 = pneg %p72
      %p124 = scmp.lt.s32.totalorder %s16, 1
      %s125 = scalar_select %p124, %s16, 1
      %p126 = scmp.lt.s32.totalorder %s17, 0
      %s127 = scalar_select %p126, %s17, 0
      %s128 = sadd.s32 %s127, %s125
      %s129 = smul.addr %s128, 8
      %s130 = scalar_lea.vmem %s1, %s129
      %p131 = scmp.lt.s32.totalorder %s16, 1
      %s132 = scalar_select %p131, %s16, 1
      %p133 = scmp.lt.s32.totalorder %s17, 0
      %s134 = scalar_select %p133, %s17, 0
      %s135 = smul.addr %s132, 32
      %s136 = sadd.s32 %s134, %s135
      %s137 = smul.addr %s136, 8
      %s138 = scalar_lea.vmem %s0, %s137
      %p139 = scmp.lt.s32.totalorder %s16, 1
      %s140 = scalar_select %p139, %s16, 1
      %p141 = scmp.lt.s32.totalorder %s17, 0
      %s142 = scalar_select %p141, %s17, 0
      %s143 = sadd.s32 %s142, %s140
      %s144 = smul.addr %s143, 8
      %s145 = scalar_lea.vmem %s1, %s144
      %v146 = vld [vmem:[%s138] sm:$0xff]
      %s148 = ssub.s32 256, 1
      %149 = vst [vmem:[#allocation2] sm:%s148] %v146
      %s150 = scalar_lea.vmem %s138, 8
      %v151 = vld [vmem:[%s150] sm:$0xff]
      %s152 = scalar_lea.vmem [#allocation2], 8
      %s154 = ssub.s32 256, 1
      %155 = vst [vmem:[%s152] sm:%s154] %v151
      %s156 = scalar_lea.vmem %s138, 16
      %v157 = vld [vmem:[%s156] sm:$0xff]
      %s158 = scalar_lea.vmem [#allocation2], 16
      %s160 = ssub.s32 256, 1
      %161 = vst [vmem:[%s158] sm:%s160] %v157
      %s162 = scalar_lea.vmem %s138, 24
      %v163 = vld [vmem:[%s162] sm:$0xff]
      %s164 = scalar_lea.vmem [#allocation2], 24
      %s166 = ssub.s32 256, 1
      %167 = vst [vmem:[%s164] sm:%s166] %v163
      %s168 = scalar_lea.vmem %s138, 32
      %v169 = vld [vmem:[%s168] sm:$0xff]
      %s170 = scalar_lea.vmem [#allocation2], 32
      %s172 = ssub.s32 256, 1
      %173 = vst [vmem:[%s170] sm:%s172] %v169
      %s174 = scalar_lea.vmem %s138, 40
      %v175 = vld [vmem:[%s174] sm:$0xff]
      %s176 = scalar_lea.vmem [#allocation2], 40
      %s178 = ssub.s32 256, 1
      %179 = vst [vmem:[%s176] sm:%s178] %v175
      %s180 = scalar_lea.vmem %s138, 48
      %v181 = vld [vmem:[%s180] sm:$0xff]
      %s182 = scalar_lea.vmem [#allocation2], 48
      %s184 = ssub.s32 256, 1
      %185 = vst [vmem:[%s182] sm:%s184] %v181
      %s186 = scalar_lea.vmem %s138, 56
      %v187 = vld [vmem:[%s186] sm:$0xff]
      %s188 = scalar_lea.vmem [#allocation2], 56
      %s190 = ssub.s32 256, 1
      %191 = vst [vmem:[%s188] sm:%s190] %v187
      %s192 = scalar_lea.vmem %s138, 64
      %v193 = vld [vmem:[%s192] sm:$0xff]
      %s194 = scalar_lea.vmem [#allocation2], 64
      %s196 = ssub.s32 256, 1
      %197 = vst [vmem:[%s194] sm:%s196] %v193
      %s198 = scalar_lea.vmem %s138, 72
      %v199 = vld [vmem:[%s198] sm:$0xff]
      %s200 = scalar_lea.vmem [#allocation2], 72
      %s202 = ssub.s32 256, 1
      %203 = vst [vmem:[%s200] sm:%s202] %v199
      %s204 = scalar_lea.vmem %s138, 80
      %v205 = vld [vmem:[%s204] sm:$0xff]
      %s206 = scalar_lea.vmem [#allocation2], 80
      %s208 = ssub.s32 256, 1
      %209 = vst [vmem:[%s206] sm:%s208] %v205
      %s210 = scalar_lea.vmem %s138, 88
      %v211 = vld [vmem:[%s210] sm:$0xff]
      %s212 = scalar_lea.vmem [#allocation2], 88
      %s214 = ssub.s32 256, 1
      %215 = vst [vmem:[%s212] sm:%s214] %v211
      %s216 = scalar_lea.vmem %s138, 96
      %v217 = vld [vmem:[%s216] sm:$0xff]
      %s218 = scalar_lea.vmem [#allocation2], 96
      %s220 = ssub.s32 256, 1
      %221 = vst [vmem:[%s218] sm:%s220] %v217
      %s222 = scalar_lea.vmem %s138, 104
      %v223 = vld [vmem:[%s222] sm:$0xff]
      %s224 = scalar_lea.vmem [#allocation2], 104
      %s226 = ssub.s32 256, 1
      %227 = vst [vmem:[%s224] sm:%s226] %v223
      %s228 = scalar_lea.vmem %s138, 112
      %v229 = vld [vmem:[%s228] sm:$0xff]
      %s230 = scalar_lea.vmem [#allocation2], 112
      %s232 = ssub.s32 256, 1
      %233 = vst [vmem:[%s230] sm:%s232] %v229
      %s234 = scalar_lea.vmem %s138, 120
      %v235 = vld [vmem:[%s234] sm:$0xff]
      %s236 = scalar_lea.vmem [#allocation2], 120
      %s238 = ssub.s32 256, 1
      %239 = vst [vmem:[%s236] sm:%s238] %v235
      %s240 = scalar_lea.vmem %s138, 128
      %v241 = vld [vmem:[%s240] sm:$0xff]
      %s242 = scalar_lea.vmem [#allocation2], 128
      %s244 = ssub.s32 256, 1
      %245 = vst [vmem:[%s242] sm:%s244] %v241
      %s246 = scalar_lea.vmem %s138, 136
      %v247 = vld [vmem:[%s246] sm:$0xff]
      %s248 = scalar_lea.vmem [#allocation2], 136
      %s250 = ssub.s32 256, 1
      %251 = vst [vmem:[%s248] sm:%s250] %v247
      %s252 = scalar_lea.vmem %s138, 144
      %v253 = vld [vmem:[%s252] sm:$0xff]
      %s254 = scalar_lea.vmem [#allocation2], 144
      %s256 = ssub.s32 256, 1
      %257 = vst [vmem:[%s254] sm:%s256] %v253
      %s258 = scalar_lea.vmem %s138, 152
      %v259 = vld [vmem:[%s258] sm:$0xff]
      %s260 = scalar_lea.vmem [#allocation2], 152
      %s262 = ssub.s32 256, 1
      %263 = vst [vmem:[%s260] sm:%s262] %v259
      %s264 = scalar_lea.vmem %s138, 160
      %v265 = vld [vmem:[%s264] sm:$0xff]
      %s266 = scalar_lea.vmem [#allocation2], 160
      %s268 = ssub.s32 256, 1
      %269 = vst [vmem:[%s266] sm:%s268] %v265
      %s270 = scalar_lea.vmem %s138, 168
      %v271 = vld [vmem:[%s270] sm:$0xff]
      %s272 = scalar_lea.vmem [#allocation2], 168
      %s274 = ssub.s32 256, 1
      %275 = vst [vmem:[%s272] sm:%s274] %v271
      %s276 = scalar_lea.vmem %s138, 176
      %v277 = vld [vmem:[%s276] sm:$0xff]
      %s278 = scalar_lea.vmem [#allocation2], 176
      %s280 = ssub.s32 256, 1
      %281 = vst [vmem:[%s278] sm:%s280] %v277
      %s282 = scalar_lea.vmem %s138, 184
      %v283 = vld [vmem:[%s282] sm:$0xff]
      %s284 = scalar_lea.vmem [#allocation2], 184
      %s286 = ssub.s32 256, 1
      %287 = vst [vmem:[%s284] sm:%s286] %v283
      %s288 = scalar_lea.vmem %s138, 192
      %v289 = vld [vmem:[%s288] sm:$0xff]
      %s290 = scalar_lea.vmem [#allocation2], 192
      %s292 = ssub.s32 256, 1
      %293 = vst [vmem:[%s290] sm:%s292] %v289
      %s294 = scalar_lea.vmem %s138, 200
      %v295 = vld [vmem:[%s294] sm:$0xff]
      %s296 = scalar_lea.vmem [#allocation2], 200
      %s298 = ssub.s32 256, 1
      %299 = vst [vmem:[%s296] sm:%s298] %v295
      %s300 = scalar_lea.vmem %s138, 208
      %v301 = vld [vmem:[%s300] sm:$0xff]
      %s302 = scalar_lea.vmem [#allocation2], 208
      %s304 = ssub.s32 256, 1
      %305 = vst [vmem:[%s302] sm:%s304] %v301
      %s306 = scalar_lea.vmem %s138, 216
      %v307 = vld [vmem:[%s306] sm:$0xff]
      %s308 = scalar_lea.vmem [#allocation2], 216
      %s310 = ssub.s32 256, 1
      %311 = vst [vmem:[%s308] sm:%s310] %v307
      %s312 = scalar_lea.vmem %s138, 224
      %v313 = vld [vmem:[%s312] sm:$0xff]
      %s314 = scalar_lea.vmem [#allocation2], 224
      %s316 = ssub.s32 256, 1
      %317 = vst [vmem:[%s314] sm:%s316] %v313
      %s318 = scalar_lea.vmem %s138, 232
      %v319 = vld [vmem:[%s318] sm:$0xff]
      %s320 = scalar_lea.vmem [#allocation2], 232
      %s322 = ssub.s32 256, 1
      %323 = vst [vmem:[%s320] sm:%s322] %v319
      %s324 = scalar_lea.vmem %s138, 240
      %v325 = vld [vmem:[%s324] sm:$0xff]
      %s326 = scalar_lea.vmem [#allocation2], 240
      %s328 = ssub.s32 256, 1
      %329 = vst [vmem:[%s326] sm:%s328] %v325
      %s330 = scalar_lea.vmem %s138, 248
      %v331 = vld [vmem:[%s330] sm:$0xff]
      %s332 = scalar_lea.vmem [#allocation2], 248
      %s334 = ssub.s32 256, 1
      %335 = vst [vmem:[%s332] sm:%s334] %v331
      %v336 = vld [vmem:[#allocation2] sm:$0xff]
      %v337 = vld [vmem:[#allocation2 + $0x8] sm:$0xff]
      %v338 = vld [vmem:[#allocation2 + $0x10] sm:$0xff]
      %v339 = vld [vmem:[#allocation2 + $0x18] sm:$0xff]
      %v340 = vld [vmem:[#allocation2 + $0x20] sm:$0xff]
      %v341 = vld [vmem:[#allocation2 + $0x28] sm:$0xff]
      %v342 = vld [vmem:[#allocation2 + $0x30] sm:$0xff]
      %v343 = vld [vmem:[#allocation2 + $0x38] sm:$0xff]
      %v344 = vld [vmem:[#allocation2 + $0x40] sm:$0xff]
      %v345 = vld [vmem:[#allocation2 + $0x48] sm:$0xff]
      %v346 = vld [vmem:[#allocation2 + $0x50] sm:$0xff]
      %v347 = vld [vmem:[#allocation2 + $0x58] sm:$0xff]
      %v348 = vld [vmem:[#allocation2 + $0x60] sm:$0xff]
      %v349 = vld [vmem:[#allocation2 + $0x68] sm:$0xff]
      %v350 = vld [vmem:[#allocation2 + $0x70] sm:$0xff]
      %v351 = vld [vmem:[#allocation2 + $0x78] sm:$0xff]
      %v352 = vld [vmem:[#allocation2 + $0x80] sm:$0xff]
      %v353 = vld [vmem:[#allocation2 + $0x88] sm:$0xff]
      %v354 = vld [vmem:[#allocation2 + $0x90] sm:$0xff]
      %v355 = vld [vmem:[#allocation2 + $0x98] sm:$0xff]
      %v356 = vld [vmem:[#allocation2 + $0xa0] sm:$0xff]
      %v357 = vld [vmem:[#allocation2 + $0xa8] sm:$0xff]
      %v358 = vld [vmem:[#allocation2 + $0xb0] sm:$0xff]
      %v359 = vld [vmem:[#allocation2 + $0xb8] sm:$0xff]
      %v360 = vld [vmem:[#allocation2 + $0xc0] sm:$0xff]
      %v361 = vld [vmem:[#allocation2 + $0xc8] sm:$0xff]
      %v362 = vld [vmem:[#allocation2 + $0xd0] sm:$0xff]
      %v363 = vld [vmem:[#allocation2 + $0xd8] sm:$0xff]
      %v364 = vld [vmem:[#allocation2 + $0xe0] sm:$0xff]
      %v365 = vld [vmem:[#allocation2 + $0xe8] sm:$0xff]
      %v366 = vld [vmem:[#allocation2 + $0xf0] sm:$0xff]
      %v367 = vld [vmem:[#allocation2 + $0xf8] sm:$0xff]
      %vm368 = vcmask 31744
      %v369 = vsel %vm368, %v336, -inf
      %v370 = vsel %vm368, %v338, -inf
      %v371 = vsel %vm368, %v340, -inf
      %v372 = vmax.f32 %v369, %v371
      %v373 = vsel %vm368, %v342, -inf
      %v374 = vmax.f32 %v370, %v373
      %v375 = vsel %vm368, %v344, -inf
      %v376 = vmax.f32 %v372, %v375
      %v377 = vsel %vm368, %v346, -inf
      %v378 = vmax.f32 %v374, %v377
      %v379 = vsel %vm368, %v348, -inf
      %v380 = vmax.f32 %v376, %v379
      %v381 = vsel %vm368, %v350, -inf
      %v382 = vmax.f32 %v378, %v381
      %v383 = vsel %vm368, %v352, -inf
      %v384 = vmax.f32 %v380, %v383
      %v385 = vsel %vm368, %v354, -inf
      %v386 = vmax.f32 %v382, %v385
      %v387 = vsel %vm368, %v356, -inf
      %v388 = vmax.f32 %v384, %v387
      %v389 = vsel %vm368, %v358, -inf
      %v390 = vmax.f32 %v386, %v389
      %v391 = vsel %vm368, %v360, -inf
      %v392 = vmax.f32 %v388, %v391
      %v393 = vsel %vm368, %v362, -inf
      %v394 = vmax.f32 %v390, %v393
      %v395 = vsel %vm368, %v364, -inf
      %v396 = vmax.f32 %v392, %v395
      %v397 = vsel %vm368, %v366, -inf
      %v398 = vmax.f32 %v394, %v397
      %v399 = vmax.f32 %v396, %v398
      %v400 = vsel %vm368, %v337, -inf
      %v401 = vsel %vm368, %v339, -inf
      %v402 = vsel %vm368, %v341, -inf
      %v403 = vmax.f32 %v400, %v402
      %v404 = vsel %vm368, %v343, -inf
      %v405 = vmax.f32 %v401, %v404
      %v406 = vsel %vm368, %v345, -inf
      %v407 = vmax.f32 %v403, %v406
      %v408 = vsel %vm368, %v347, -inf
      %v409 = vmax.f32 %v405, %v408
      %v410 = vsel %vm368, %v349, -inf
      %v411 = vmax.f32 %v407, %v410
      %v412 = vsel %vm368, %v351, -inf
      %v413 = vmax.f32 %v409, %v412
      %v414 = vsel %vm368, %v353, -inf
      %v415 = vmax.f32 %v411, %v414
      %v416 = vsel %vm368, %v355, -inf
      %v417 = vmax.f32 %v413, %v416
      %v418 = vsel %vm368, %v357, -inf
      %v419 = vmax.f32 %v415, %v418
      %v420 = vsel %vm368, %v359, -inf
      %v421 = vmax.f32 %v417, %v420
      %v422 = vsel %vm368, %v361, -inf
      %v423 = vmax.f32 %v419, %v422
      %v424 = vsel %vm368, %v363, -inf
      %v425 = vmax.f32 %v421, %v424
      %v426 = vsel %vm368, %v365, -inf
      %v427 = vmax.f32 %v423, %v426
      %v428 = vsel %vm368, %v367, -inf
      %v429 = vmax.f32 %v425, %v428
      %v430 = vmax.f32 %v427, %v429
      %v431 = vsel %vm368, %v399, -inf
      %v432 = vsel %vm368, %v430, -inf
      %v433 = vmax.f32 %v431, %v432
      %v434 = vrot.slane %v433, 4
      %v435 = vmax.f32 %v433, %v434
      %v436 = vrot.slane %v435, 2
      %v437 = vmax.f32 %v435, %v436
      %v438 = vrot.slane %v437, 1
      %v439 = vmax.f32 %v437, %v438
      %v440 = vrot.slane %v431, 4
      %v441 = vmax.f32 %v431, %v440
      %v442 = vrot.slane %v441, 2
      %v443 = vmax.f32 %v441, %v442
      %v444 = vrot.slane %v443, 1
      %v445 = vmax.f32 %v443, %v444
      %v446 = vrot.slane %v432, 4
      %v447 = vmax.f32 %v432, %v446
      %v448 = vrot.slane %v447, 2
      %v449 = vmax.f32 %v447, %v448
      %v450 = vrot.slane %v449, 1
      %v451 = vmax.f32 %v449, %v450
      %vm452 = vcmask 28672
      %v453 = vsel %vm452, %v399, -inf
      %v454 = vrot.slane %v453, 4
      %v455 = vmax.f32 %v453, %v454
      %v456 = vrot.slane %v455, 2
      %v457 = vmax.f32 %v455, %v456
      %v458 = vrot.slane %v457, 1
      %v459 = vmax.f32 %v457, %v458
      %vm460 = vcmask 31749
      %v461 = vsel %vm460, %v399, -inf
      %vm462 = vcmask 25600
      %v463 = vsel %vm462, %v430, -inf
      %v464 = vmax.f32 %v461, %v463
      %v465 = vrot.slane %v464, 4
      %v466 = vmax.f32 %v464, %v465
      %v467 = vrot.slane %v466, 2
      %v468 = vmax.f32 %v466, %v467
      %v469 = vrot.slane %v468, 1
      %v470 = vmax.f32 %v468, %v469
      %vm471 = vcmask 30722
      %v472 = vsel %vm471, %v430, -inf
      %v473 = vrot.slane %v472, 4
      %v474 = vmax.f32 %v472, %v473
      %v475 = vrot.slane %v474, 2
      %v476 = vmax.f32 %v474, %v475
      %v477 = vrot.slane %v476, 1
      %v478 = vmax.f32 %v476, %v477
      %vm479 = vcmask 1040384
      %v480 = vsel %vm479, %v439, %v445
      %vm481 = vcmask 1041408
      %v482 = vsel %vm481, %v480, %v451
      %vm483 = vcmask 1042432
      %v484 = vsel %vm483, %v482, %v459
      %vm485 = vcmask 1043456
      %v486 = vsel %vm485, %v484, %v470
      %vm487 = vcmask 1044480
      %v488 = vsel %vm487, %v486, %v478
      %vm489 = vcmask 29696
      %490 = vst.msk [vmem:[%s145] sm:$0x3f] %vm489, %v488
      %p491 = scmp.lt.s32.totalorder %s16, 1
      %s492 = scalar_select %p491, %s16, 1
      %p493 = scmp.lt.s32.totalorder %s17, 0
      %s494 = scalar_select %p493, %s17, 0
      %s495 = sadd.s32 %s494, %s492
      %s496 = smul.addr %s495, 8
      %s497 = scalar_lea.vmem %s1, %s496
      // Predicated region
      $region25: #{spp_layer.2} parent=23 // pred_check
        %p498 = pneg %p72
      $region26: #{spp_layer.2} parent=23 // pred_check_branch
        %500 = sbr.rel (%p498) target = $region28
      $region27: #{spp_layer.2} parent=23 // pred_region
        _
      $region28: #{spp_layer.2} parent=23 // pred_fallthru
        _
    $region24: #{spp_layer.2} parent=5 // pred_fallthru
      _
    %p501 = scmp.le.s32.totalorder 2, %s7
    // Predicated region
    $region29: #{spp_layer.2} parent=5 // pred_check
      %p502 = pneg %p501
    $region30: #{spp_layer.2} parent=5 // pred_check_branch
      %504 = sbr.rel (%p502) target = $region32
    $region31: #{spp_layer.2} parent=5 // pred_region
      %s505 = ssub.s32 %s7, 2
      // Predicated region
      $region33: #{spp_layer.2} parent=31 // pred_check
        %p506 = pneg %p78
      $region34: #{spp_layer.2} parent=31 // pred_check_branch
        %508 = sbr.rel (%p506) target = $region36
      $region35: #{spp_layer.2} parent=31 // pred_region
        %p509 = scmp.lt.s32.totalorder %s18, 1
        %s510 = scalar_select %p509, %s18, 1
        %p511 = scmp.lt.s32.totalorder %s19, 0
        %s512 = scalar_select %p511, %s19, 0
        %s513 = sadd.s32 %s512, %s510
        %s514 = smul.addr %s513, 8
        %s515 = scalar_lea.vmem %s1, %s514
      $region36: #{spp_layer.2} parent=31 // pred_fallthru
        _
    $region32: #{spp_layer.2} parent=5 // pred_fallthru
      _
  $region6: #{spp_layer.2} parent=0 // loop_footer
    %s11 = sadd.s32 1, %s7
  $region7: #{spp_layer.2} parent=0 // loop_footer_branch
    %6 = sbr.rel target = $region3
  $region8: #{spp_layer.2} parent=0 // loop_exit
    _

</llo_original>
